<compile_context>
chip_gen: v5e
topology: v5e:2x2
jax: 0.10.0
libtpu: 0.0.40
codegen_flags: <defaults>
</compile_context>

<pallas_src>
import functools

import jax
import jax.numpy as jnp
from jax.experimental import pallas as pl
from jax.experimental.pallas import tpu as pltpu


_TARGET_BLOCK_BYTES = 1 << 20  # ~1 MiB per input block: at the HBM roofline
                               # plateau; 2 inputs x 2 buffers + f32 acc fits
                               # every generation's default scoped VMEM.


def _pick_block_rows(total_rows, row_bytes):
    """Rows per block: ~1 MiB worth, multiple of 8 (sublane) or full extent."""
    rows = _TARGET_BLOCK_BYTES // max(1, row_bytes)
    if rows >= total_rows or total_rows <= 8:
        return total_rows                  # full extent -> always layout-legal
    return max(8, (rows // 8) * 8)         # multiple of 8 -> layout-legal


def _sq_err_kernel(r_ref, x_ref, o_ref, acc_ref, *, block_rows, total_rows,
                   n_valid, needs_mask):
    """Accumulates (x - r)^2 elementwise into a VMEM accumulator.

    r_ref, x_ref : VMEM blocks (block_rows, H*W), native dtype.
    o_ref        : SMEM (1, 1) f32 output (the scalar loss).
    acc_ref      : VMEM (block_rows, H*W) f32 accumulator (persists over grid).
    """
    i = pl.program_id(0)

    @pl.when(i == 0)
    def _init():
        acc_ref[...] = jnp.zeros_like(acc_ref)

    d = x_ref[...].astype(jnp.float32) - r_ref[...].astype(jnp.float32)
    dsq = d * d

    if needs_mask:  # static: only when the row count is ragged w.r.t. block_rows
        rows = jax.lax.broadcasted_iota(jnp.int32, dsq.shape, 0)
        dsq = jnp.where(i * block_rows + rows < total_rows, dsq, 0.0)

    acc_ref[...] += dsq  # pure VPU elementwise add; no per-step reduce

    @pl.when(i == pl.num_programs(0) - 1)
    def _finalize():
        # Single cross-lane reduce + divide, once.
        o_ref[0, 0] = jnp.sum(acc_ref[...]) / jnp.float32(n_valid)


@jax.jit
def ae_loss(recon_x, mu, logvar, target):
    """JAX/Pallas equivalent of AE_loss.forward((recon_x, mu, logvar), target)."""
    del mu, logvar  # unused by the reference forward pass

    N, C, D, H, W = target.shape
    G = N * C                 # rows of the depth-0 slab
    HW = H * W                # elements per row
    n_valid = G * HW

    if HW % 128 == 0 or D == 1:
        # Fused-slice path (no HBM copies): view as (G, D*H*W); block index 0
        # along the fused last axis is exactly the depth-0 slab of each row.
        r_view = recon_x.reshape(G, D * HW)
        x_view = target.reshape(G, D * HW)
    else:
        # Rare fallback (HW not lane-aligned and D > 1): materialize the slice
        # with XLA once, then stream it densely (last block dim == full dim).
        r_view = recon_x[:, :, 0].reshape(G, HW)
        x_view = target[:, :, 0].reshape(G, HW)

    itemsize = max(jnp.dtype(recon_x.dtype).itemsize,
                   jnp.dtype(target.dtype).itemsize)
    bg = _pick_block_rows(G, HW * itemsize)
    grid_steps = pl.cdiv(G, bg)
    needs_mask = (G % bg) != 0

    kernel = functools.partial(
        _sq_err_kernel,
        block_rows=bg, total_rows=G, n_valid=n_valid, needs_mask=needs_mask)

    in_spec = pl.BlockSpec((bg, HW), lambda i: (i, 0))

    out = pl.pallas_call(
        kernel,
        out_shape=jax.ShapeDtypeStruct((1, 1), jnp.float32),
        grid_spec=pltpu.PrefetchScalarGridSpec(
            num_scalar_prefetch=0,
            grid=(grid_steps,),
            in_specs=[in_spec, in_spec],
            out_specs=pl.BlockSpec(
                (1, 1), lambda i: (0, 0), memory_space=pltpu.SMEM),
            scratch_shapes=[pltpu.VMEM((bg, HW), jnp.float32)],
        ),
        compiler_params=pltpu.CompilerParams(
            dimension_semantics=("arbitrary",)),
    )(r_view, x_view)

    return out[0, 0]


if __name__ == "__main__":
    key = jax.random.PRNGKey(0)
    k1, k2, k3, k4 = jax.random.split(key, 4)

    # Small NCDHW shapes consistent with the forward pass's [:, :, 0] slicing.
    N, C, D, H, W = 2, 4, 8, 16, 16
    latent = 32

    target = jax.random.normal(k1, (N, C, D, H, W), dtype=jnp.float32)
    recon_x = jax.random.normal(k2, (N, C, D, H, W), dtype=jnp.float32)
    mu = jax.random.normal(k3, (N, latent), dtype=jnp.float32)
    logvar = jax.random.normal(k4, (N, latent), dtype=jnp.float32)

    loss = jax.block_until_ready(ae_loss(recon_x, mu, logvar, target))

    # Pure-JAX reference check (MSE with reduction='mean').
    ref = jnp.mean((recon_x[:, :, 0] - target[:, :, 0]) ** 2)
    assert jnp.allclose(loss, ref, rtol=1e-5, atol=1e-6), (loss, ref)

    print("KERNEL_OK")
</pallas_src>

<mosaic_0001>
module attributes {stable_mosaic.version = 11 : i64} {
  func.func @_sq_err_kernel(%arg0: i32, %arg1: memref<8x256xf32, #tpu.memory_space<vmem>>, %arg2: memref<8x256xf32, #tpu.memory_space<vmem>>, %arg3: memref<1x1xf32, #tpu.memory_space<smem>>, %arg4: memref<8x256xf32, #tpu.memory_space<vmem>>) attributes {dimension_semantics = [#tpu.dimension_semantics<arbitrary>], iteration_bounds = array<i64: 1>, scalar_prefetch = 0 : i64, scratch_operands = 1 : i64, tpu.core_type = #tpu.core_type<tc>, window_params = [{transform_indices = @transform_0, window_bounds = array<i64: 8, 256>}, {transform_indices = @transform_1, window_bounds = array<i64: 8, 256>}, {transform_indices = @transform_2, window_bounds = array<i64: 1, 1>}]} {
    %c0_i32 = arith.constant 0 : i32
    %0 = arith.cmpi eq, %arg0, %c0_i32 : i32
    %1 = arith.extui %0 : i1 to i32
    %c0_i32_0 = arith.constant 0 : i32
    %2 = arith.cmpi ne, %1, %c0_i32_0 : i32
    scf.if %2 {
      %cst = arith.constant 0.000000e+00 : f32
      %13 = vector.broadcast %cst : f32 to vector<8x256xf32>
      %c0_10 = arith.constant 0 : index
      %c0_11 = arith.constant 0 : index
      %14 = vector.load %arg4[%c0_10, %c0_11] : memref<8x256xf32, #tpu.memory_space<vmem>>, vector<8x256xf32>
      tpu.vector_store %arg4[%c0_10, %c0_11], %13 {strides = array<i32>} : memref<8x256xf32, #tpu.memory_space<vmem>>, vector<8x256xf32>,
    } else {
    }
    %c0 = arith.constant 0 : index
    %c0_1 = arith.constant 0 : index
    %3 = vector.load %arg2[%c0, %c0_1] : memref<8x256xf32, #tpu.memory_space<vmem>>, vector<8x256xf32>
    %c0_2 = arith.constant 0 : index
    %c0_3 = arith.constant 0 : index
    %4 = vector.load %arg1[%c0_2, %c0_3] : memref<8x256xf32, #tpu.memory_space<vmem>>, vector<8x256xf32>
    %5 = arith.subf %3, %4 : vector<8x256xf32>
    %6 = arith.mulf %5, %5 : vector<8x256xf32>
    %c0_4 = arith.constant 0 : index
    %c0_5 = arith.constant 0 : index
    %7 = vector.load %arg4[%c0_4, %c0_5] : memref<8x256xf32, #tpu.memory_space<vmem>>, vector<8x256xf32>
    %8 = arith.addf %7, %6 : vector<8x256xf32>
    %c0_6 = arith.constant 0 : index
    %c0_7 = arith.constant 0 : index
    %9 = vector.load %arg4[%c0_6, %c0_7] : memref<8x256xf32, #tpu.memory_space<vmem>>, vector<8x256xf32>
    tpu.vector_store %arg4[%c0_6, %c0_7], %8 {strides = array<i32>} : memref<8x256xf32, #tpu.memory_space<vmem>>, vector<8x256xf32>,
    %c0_i32_8 = arith.constant 0 : i32
    %10 = arith.cmpi eq, %arg0, %c0_i32_8 : i32
    %11 = arith.extui %10 : i1 to i32
    %c0_i32_9 = arith.constant 0 : i32
    %12 = arith.cmpi ne, %11, %c0_i32_9 : i32
    scf.if %12 {
      %c0_10 = arith.constant 0 : index
      %c0_11 = arith.constant 0 : index
      %13 = vector.load %arg4[%c0_10, %c0_11] : memref<8x256xf32, #tpu.memory_space<vmem>>, vector<8x256xf32>
      %14 = vector.shape_cast %13 : vector<8x256xf32> to vector<1x8x256xf32>
      %cst = arith.constant dense<0.000000e+00> : vector<1xf32>
      %15 = vector.multi_reduction <add>, %14, %cst [1, 2] : vector<1x8x256xf32> to vector<1xf32>
      %16 = vector.shape_cast %15 : vector<1xf32> to vector<1x1x1xf32>
      %17 = vector.extract %16[0, 0, 0] : f32 from vector<1x1x1xf32>
      %cst_12 = arith.constant 2.048000e+03 : f32
      %18 = arith.divf %17, %cst_12 : f32
      %c0_13 = arith.constant 0 : index
      %c0_14 = arith.constant 0 : index
      %19 = memref.load %arg3[%c0_13, %c0_14] : memref<1x1xf32, #tpu.memory_space<smem>>
      memref.store %18, %arg3[%c0_13, %c0_14] : memref<1x1xf32, #tpu.memory_space<smem>>
    } else {
    }
    return
  }
  func.func @transform_0(%arg0: i32) -> (i32, i32) {
    %c0_i32 = arith.constant 0 : i32
    %c0_i32_0 = arith.constant 0 : i32
    return %arg0, %c0_i32 : i32, i32
  }
  func.func @transform_1(%arg0: i32) -> (i32, i32) {
    %c0_i32 = arith.constant 0 : i32
    %c0_i32_0 = arith.constant 0 : i32
    return %arg0, %c0_i32 : i32, i32
  }
  func.func @transform_2(%arg0: i32) -> (i32, i32) {
    %c0_i32 = arith.constant 0 : i32
    %c0_i32_0 = arith.constant 0 : i32
    %c0_i32_1 = arith.constant 0 : i32
    return %c0_i32, %c0_i32_0 : i32, i32
  }
}

</mosaic_0001>

<llo_original>
// kernel: ae_loss.1
$region0: #{ae_loss.1}
  #allocation0 [shape = 'u32[]', space=smem, size = 0x4, offset = 0x4, fixed_abs, tag = 'smem constant byte address 0x4 - core index']
  #allocation1 [shape = 'u32[72,128]{1,0:T(1,128)}', space=vmem, size = 0x9000, scoped, tag = 'internal scratch']
  #allocation2 [shape = 'f32[8,256]{1,0:T(8,128)}', space=vmem, size = 0x2000, scoped, tag = 'scratch operand']
  %s0 = inlined_call_operand.vmem [shape: f32[8,2048], index: 0, kind: input, shape index: {}]
  %s1 = inlined_call_operand.vmem [shape: f32[8,2048], index: 1, kind: input, shape index: {}]
  %s2 = inlined_call_operand.hbm [shape: f32[1,1], index: 2, kind: output, shape index: {}]
  %s3 = sld [smem:[#allocation0]]
  $region26: #{ae_loss.1} parent=0
    _
  %s5 = ssub.s32 1, %s3
  %s6 = scalar_select 0, %s5, %s3
  $region1: #{ae_loss.1} parent=0
    #allocation3 [shape = 'u8[512]{0}', space=smem, size = 0x200, scoped, tag = 'output window, operand 0, single buffered']
    #allocation4 [shape = 's32[1]{0}', space=sflag, size = 0x4, scoped, tag = 'scoped memory for ae_loss.1']
    %7 = vsyncpa [#allocation4], 0
    // Predicated region
    $region2: #{ae_loss.1} parent=1 // pred_check
      _
    $region3: #{ae_loss.1} parent=1 // pred_check_branch
      %9 = sbr.rel (0) target = $region5
    $region4: #{ae_loss.1} parent=1 // pred_region
      _
    $region5: #{ae_loss.1} parent=1 // pred_fallthru
      _
    // Predicated region
    $region6: #{ae_loss.1} parent=1 // pred_check
      _
    $region7: #{ae_loss.1} parent=1 // pred_check_branch
      %11 = sbr.rel (0) target = $region9
    $region8: #{ae_loss.1} parent=1 // pred_region
      _
    $region9: #{ae_loss.1} parent=1 // pred_fallthru
      _
    %p12 = scmp.eq.s32.totalorder 0, 0
    // Predicated region
    $region10: #{ae_loss.1} parent=1 // pred_check
      %p13 = pneg %p12
    $region11: #{ae_loss.1} parent=1 // pred_check_branch
      %15 = sbr.rel (%p13) target = $region13
    $region12: #{ae_loss.1} parent=1 // pred_region
      %16 = vst [vmem:[#allocation2] sm:$0xff] 0.0
      %17 = vst [vmem:[#allocation2 + $0x8] sm:$0xff] 0.0
    $region13: #{ae_loss.1} parent=1 // pred_fallthru
      _
    %v18 = vld [vmem:[%s1] sm:$0xff]
    %v19 = vld [vmem:[%s1 + $0x8] sm:$0xff]
    %v20 = vld [vmem:[%s0] sm:$0xff]
    %v21 = vld [vmem:[%s0 + $0x8] sm:$0xff]
    %v22 = vsub.f32 %v18, %v20
    %v23 = vsub.f32 %v19, %v21
    %v24 = vmul.f32 %v22, %v22
    %v25 = vmul.f32 %v23, %v23
    %v26 = vld [vmem:[#allocation2] sm:$0xff]
    %v27 = vld [vmem:[#allocation2 + $0x8] sm:$0xff]
    %v28 = vadd.f32 %v26, %v24
    %v29 = vadd.f32 %v27, %v25
    %30 = vst [vmem:[#allocation2] sm:$0xff] %v28
    %31 = vst [vmem:[#allocation2 + $0x8] sm:$0xff] %v29
    // Predicated region
    $region14: #{ae_loss.1} parent=1 // pred_check
      %p32 = pneg %p12
    $region15: #{ae_loss.1} parent=1 // pred_check_branch
      %34 = sbr.rel (%p32) target = $region17
    $region16: #{ae_loss.1} parent=1 // pred_region
      %v35 = vld [vmem:[#allocation2] sm:$0xff]
      %v36 = vld [vmem:[#allocation2 + $0x8] sm:$0xff]
      %v37 = vadd.f32 %v35, %v36
      %38 = vadd.xlane.f32.xlu0 %v37
      %v39 = vpop.xlane.xlu0 %38
      %v40 = vrot.slane %v39, 4
      %v41 = vadd.f32 %v39, %v40
      %v42 = vrot.slane %v41, 2
      %v43 = vadd.f32 %v41, %v42
      %v44 = vrot.slane %v43, 1
      %v45 = vadd.f32 %v43, %v44
      %s46 = vtos %v45
      %v47 = vrcp.pop 2048.0
      %v48 = vmul.f32 2048.0, %v47
      %v49 = vsub.f32 1.0, %v48
      %v50 = vmul.f32 %v47, %v49
      %v51 = vadd.f32 %v47, %v50
      %vm52 = vweird.f32 %v47
      %v53 = vsel %vm52, %v47, %v51
      %s54 = vtos %v53
      %s55 = smul.f32 %s46, %s54
      %s56 = scalar_lea.smem [#allocation3], 0
      %57 = sst [smem:[%s56]] %s55
    $region17: #{ae_loss.1} parent=1 // pred_fallthru
      _
    // Predicated region
    $region18: #{ae_loss.1} parent=1 // pred_check
      _
    $region19: #{ae_loss.1} parent=1 // pred_check_branch
      %59 = sbr.rel (0) target = $region21
    $region20: #{ae_loss.1} parent=1 // pred_region
      %61 = vsyncadd [#allocation4], 0
      %s63 = sshll.u32 %s2, 4
      %s64 = int_to_ptr.hbm [resolvable:$true] %s63
      %66 = dma.smem_to_hbm [#allocation3], 16, %s64, [#allocation4]
    $region21: #{ae_loss.1} parent=1 // pred_fallthru
      _
    // Predicated region
    $region22: #{ae_loss.1} parent=1 // pred_check
      _
    $region23: #{ae_loss.1} parent=1 // pred_check_branch
      %68 = sbr.rel (0) target = $region25
    $region24: #{ae_loss.1} parent=1 // pred_region
      %70 = dma.done [#allocation4], 16
    $region25: #{ae_loss.1} parent=1 // pred_fallthru
      _
    %71 = sfence
    %72 = vsyncpa [#allocation4], 1

</llo_original>
